<compile_context>
chip_gen: v6e
topology: v6e:2x2x1
jax: 0.10.0
libtpu: 0.0.40
codegen_flags: <defaults>
</compile_context>

<pallas_src>
import jax
import jax.numpy as jnp
from jax.experimental import pallas as pl
from jax.experimental.pallas import tpu as pltpu

_LANE = 128       # lane width of the flattened slab
_SUB_ROWS = 512   # rows per in-kernel accumulation sub-chunk (multiple of 8/16/32)


def _round_up(a: int, b: int) -> int:
    return -(-a // b) * b


def _default_budget():
    """(max_block_bytes per input, vmem_limit_bytes), keyed off physical VMEM."""
    try:
        vmem_cap = pltpu.get_tpu_info().vmem_capacity_bytes
    except Exception:
        vmem_cap = 64 * 1024 * 1024
    if vmem_cap >= 96 * 1024 * 1024:              # v5e / v6e: 128 MiB physical VMEM
        return 8 * 1024 * 1024, 64 * 1024 * 1024
    return 4 * 1024 * 1024, 40 * 1024 * 1024      # v7x: 64 MiB physical VMEM


def _make_partial_kernel(row_tile, sub_rows, valid_rows, needs_mask):
    """Kernel producing one (8,128) f32 partial sum of (x - t)^2 per grid step."""
    n_sub = row_tile // sub_rows

    def sub_chunk_sum(x_blk, t_blk, global_row0):
        # Cast BEFORE subtracting so low-precision inputs don't cancel in bf16/fp16.
        d = x_blk.astype(jnp.float32) - t_blk.astype(jnp.float32)
        sq = d * d
        if needs_mask:
            # Mask rows past the end of the real array (Pallas DMAs garbage for the
            # overhanging tail of the edge block); jnp.where makes NaN/Inf harmless.
            ridx = global_row0 + jax.lax.broadcasted_iota(jnp.int32, sq.shape, 0)
            sq = jnp.where(ridx < valid_rows, sq, 0.0)
        # Tile-aligned reshape + pure VPU adds: reduce down to one (8, 128) vreg.
        return jnp.sum(sq.reshape(sub_rows // 8, 8, _LANE), axis=0)

    def kernel(x_ref, t_ref, out_ref):
        block_row0 = pl.program_id(0) * row_tile
        if n_sub == 1:
            acc = sub_chunk_sum(x_ref[...], t_ref[...], block_row0)
        else:
            def body(i, acc):
                r0 = pl.multiple_of(i * sub_rows, sub_rows)
                return acc + sub_chunk_sum(x_ref[pl.ds(r0, sub_rows), :],
                                           t_ref[pl.ds(r0, sub_rows), :],
                                           block_row0 + r0)
            acc = jax.lax.fori_loop(0, n_sub, body,
                                    jnp.zeros((8, _LANE), jnp.float32))
        out_ref[...] = acc.reshape(1, 8, _LANE)

    return kernel


def content_loss_forward(x, target, *, max_block_bytes=None, vmem_limit_bytes=None):
    """Mirrors ContentLoss.forward: returns (input_passthrough, mse_loss)."""
    assert x.shape == target.shape and x.dtype == target.dtype
    total = int(x.size)
    itemsize = jnp.dtype(x.dtype).itemsize
    packed_sub = 8 * max(1, 4 // itemsize)   # 8 (f32) / 16 (bf16, f16) / 32 (int8, fp8)

    default_blk, default_vmem = _default_budget()
    if max_block_bytes is None:
        max_block_bytes = default_blk
    if vmem_limit_bytes is None:
        vmem_limit_bytes = default_vmem

    x_flat = x.reshape(-1)
    t_flat = target.reshape(-1)
    if total % _LANE != 0:
        # TODO(synk): lane-misaligned element counts still take one minimal jnp.pad
        # (to the next multiple of 128) because a (rows, 128) view must exist at
        # all; padded zeros contribute 0 to the sum.  All row-level raggedness is
        # handled in-kernel by masking, with no wrapper-side padding.
        pad = _LANE - total % _LANE
        x_flat = jnp.pad(x_flat, (0, pad))
        t_flat = jnp.pad(t_flat, (0, pad))
    rows = x_flat.size // _LANE

    if rows <= _SUB_ROWS:
        sub_rows = _round_up(rows, packed_sub)
        row_tile = sub_rows
    else:
        sub_rows = _SUB_ROWS
        rt_cap = max(_SUB_ROWS,
                     (max_block_bytes // (_LANE * itemsize)) // _SUB_ROWS * _SUB_ROWS)
        row_tile = min(rt_cap, _round_up(rows, _SUB_ROWS))

    num_blocks = pl.cdiv(rows, row_tile)
    needs_mask = (num_blocks * row_tile != rows)

    x2d = x_flat.reshape(rows, _LANE)
    t2d = t_flat.reshape(rows, _LANE)

    kernel = _make_partial_kernel(row_tile, sub_rows, rows, needs_mask)

    partials = pl.pallas_call(
        kernel,
        out_shape=jax.ShapeDtypeStruct((num_blocks, 8, _LANE), jnp.float32),
        grid_spec=pltpu.PrefetchScalarGridSpec(
            num_scalar_prefetch=0,
            grid=(num_blocks,),
            in_specs=[
                pl.BlockSpec((row_tile, _LANE), lambda k: (k, 0)),
                pl.BlockSpec((row_tile, _LANE), lambda k: (k, 0)),
            ],
            out_specs=pl.BlockSpec((1, 8, _LANE), lambda k: (k, 0, 0)),
        ),
        compiler_params=pltpu.CompilerParams(
            # TODO(synk): on v7x, pltpu.CORE_PARALLEL (or pl.core_map over a
            # tensorcore mesh) would let both TensorCores stream half the blocks
            # each; kept "parallel" here for portability across v5e/v6e/v7x.
            dimension_semantics=("parallel",),
            vmem_limit_bytes=vmem_limit_bytes,
        ),
        cost_estimate=pl.CostEstimate(
            flops=3 * total,
            transcendentals=0,
            bytes_accessed=2 * total * itemsize + num_blocks * 8 * _LANE * 4,
        ),
    )(x2d, t2d)

    loss = jnp.sum(partials) * jnp.float32(1.0 / total)
    # Identity pass-through: return the original input array, no kernel copy.
    return x, loss


if __name__ == "__main__":
    key = jax.random.PRNGKey(0)
    keys = jax.random.split(key, 10)

    def check(x, t, **kw):
        out, loss = content_loss_forward(x, t, **kw)
        jax.block_until_ready((out, loss))
        ref = jnp.mean((x.astype(jnp.float32) - t.astype(jnp.float32)) ** 2)
        assert out is x or jnp.allclose(out, x), "pass-through output mismatch"
        assert jnp.allclose(loss, ref, rtol=1e-5, atol=1e-6), \
            f"mse loss mismatch: {loss} vs {ref}"

    # 1) NCHW feature-map-like shape (2048 elems, lane-aligned, single block).
    x = jax.random.normal(keys[0], (2, 4, 16, 16), dtype=jnp.float32)
    t = jax.random.normal(keys[1], (2, 4, 16, 16), dtype=jnp.float32)
    check(x, t)

    # 2) Ragged element count (378, not a multiple of 128): minimal 128-pad plus
    #    in-kernel masking of the edge block's garbage rows.
    x = jax.random.normal(keys[2], (2, 3, 7, 9), dtype=jnp.float32)
    t = jax.random.normal(keys[3], (2, 3, 7, 9), dtype=jnp.float32)
    check(x, t)

    # 3) 1024 rows: exercises the fori_loop sub-chunk accumulation (n_sub = 2).
    x = jax.random.normal(keys[4], (2, 8, 64, 128), dtype=jnp.float32)
    t = jax.random.normal(keys[5], (2, 8, 64, 128), dtype=jnp.float32)
    check(x, t)

    # 4) 1008 rows, forced 512-row tile: multi-block grid whose edge block is
    #    masked in-kernel (no wrapper-side padding to the tile size).
    x = jax.random.normal(keys[6], (2, 8, 63, 128), dtype=jnp.float32)
    t = jax.random.normal(keys[7], (2, 8, 63, 128), dtype=jnp.float32)
    check(x, t, max_block_bytes=512 * _LANE * 4)

    # 5) Same shape, forced 1024-row tile: fori_loop + edge masking together.
    check(x, t, max_block_bytes=1024 * _LANE * 4)

    # 6) bf16 inputs: dtype-aware sublane granularity, f32 cast before subtract.
    xb = jax.random.normal(keys[8], (2, 4, 16, 16), dtype=jnp.bfloat16)
    tb = jax.random.normal(keys[9], (2, 4, 16, 16), dtype=jnp.bfloat16)
    check(xb, tb)

    print("KERNEL_OK")
</pallas_src>

<mosaic_0001>
module attributes {stable_mosaic.version = 11 : i64} {
  func.func @kernel(%arg0: i32, %arg1: memref<16x128xf32, #tpu.memory_space<vmem>>, %arg2: memref<16x128xf32, #tpu.memory_space<vmem>>, %arg3: memref<1x8x128xf32, #tpu.memory_space<vmem>>) attributes {dimension_semantics = [#tpu.dimension_semantics<parallel>], iteration_bounds = array<i64: 1>, scalar_prefetch = 0 : i64, scratch_operands = 0 : i64, tpu.core_type = #tpu.core_type<tc>, window_params = [{transform_indices = @transform_0, window_bounds = array<i64: 16, 128>}, {transform_indices = @transform_1, window_bounds = array<i64: 16, 128>}, {transform_indices = @transform_2, window_bounds = array<i64: 1, 8, 128>}]} {
    %c0 = arith.constant 0 : index
    %c0_0 = arith.constant 0 : index
    %0 = vector.load %arg1[%c0, %c0_0] : memref<16x128xf32, #tpu.memory_space<vmem>>, vector<16x128xf32>
    %c0_1 = arith.constant 0 : index
    %c0_2 = arith.constant 0 : index
    %1 = vector.load %arg2[%c0_1, %c0_2] : memref<16x128xf32, #tpu.memory_space<vmem>>, vector<16x128xf32>
    %2 = arith.subf %0, %1 : vector<16x128xf32>
    %3 = arith.mulf %2, %2 : vector<16x128xf32>
    %4 = vector.shape_cast %3 : vector<16x128xf32> to vector<2x8x128xf32>
    %cst = arith.constant dense<0.000000e+00> : vector<8x128xf32>
    %5 = vector.multi_reduction <add>, %4, %cst [0] : vector<2x8x128xf32> to vector<8x128xf32>
    %6 = vector.shape_cast %5 : vector<8x128xf32> to vector<1x8x128xf32>
    %c0_3 = arith.constant 0 : index
    %c0_4 = arith.constant 0 : index
    %c0_5 = arith.constant 0 : index
    %7 = vector.load %arg3[%c0_3, %c0_4, %c0_5] : memref<1x8x128xf32, #tpu.memory_space<vmem>>, vector<1x8x128xf32>
    tpu.vector_store %arg3[%c0_3, %c0_4, %c0_5], %6 {strides = array<i32>} : memref<1x8x128xf32, #tpu.memory_space<vmem>>, vector<1x8x128xf32>,
    return
  }
  func.func @transform_0(%arg0: i32) -> (i32, i32) {
    %c0_i32 = arith.constant 0 : i32
    %c0_i32_0 = arith.constant 0 : i32
    return %arg0, %c0_i32 : i32, i32
  }
  func.func @transform_1(%arg0: i32) -> (i32, i32) {
    %c0_i32 = arith.constant 0 : i32
    %c0_i32_0 = arith.constant 0 : i32
    return %arg0, %c0_i32 : i32, i32
  }
  func.func @transform_2(%arg0: i32) -> (i32, i32, i32) {
    %c0_i32 = arith.constant 0 : i32
    %c0_i32_0 = arith.constant 0 : i32
    %c0_i32_1 = arith.constant 0 : i32
    return %arg0, %c0_i32, %c0_i32_0 : i32, i32, i32
  }
}

</mosaic_0001>

<llo_original>
// kernel: tpu_custom_call.1
$region0: #{tpu_custom_call.1}
  #allocation0 [shape = 'u32[]', space=smem, size = 0x4, offset = 0x4, fixed_abs, tag = 'smem constant byte address 0x4 - core index']
  #allocation1 [shape = 'u32[144,128]{1,0:T(1,128)}', space=vmem, size = 0x12000, scoped, tag = 'internal scratch']
  %s0 = inlined_call_operand.hbm [shape: f32[16,128], index: 0, kind: input, shape index: {}]
  %s1 = inlined_call_operand.hbm [shape: f32[16,128], index: 1, kind: input, shape index: {}]
  %s2 = inlined_call_operand.hbm [shape: f32[1,8,128], index: 2, kind: output, shape index: {}]
  %s3 = sld [smem:[#allocation0]]
  $region26: #{tpu_custom_call.1} parent=0
    _
  %s5 = ssub.s32 1, %s3
  %s6 = scalar_select 0, %s5, %s3
  $region1: #{tpu_custom_call.1} parent=0
    #allocation2 [shape = 'u8[8192]{0}', space=vmem, size = 0x2000, scoped, tag = 'input window, operand 0, single buffered']
    #allocation3 [shape = 's32[1]{0}', space=sflag, size = 0x4, scoped, tag = 'scoped memory for tpu_custom_call.1']
    #allocation4 [shape = 's32[1]{0}', space=sflag, size = 0x4, scoped, tag = 'scoped memory for tpu_custom_call.1']
    #allocation5 [shape = 'u8[8192]{0}', space=vmem, size = 0x2000, scoped, tag = 'input window, operand 1, single buffered']
    #allocation6 [shape = 's32[1]{0}', space=sflag, size = 0x4, scoped, tag = 'scoped memory for tpu_custom_call.1']
    #allocation7 [shape = 'u8[4096]{0}', space=vmem, size = 0x1000, scoped, tag = 'output window, operand 0, single buffered']
    %7 = vsyncpa [#allocation3], 0
    %8 = vsyncpa [#allocation6], 0
    %9 = vsyncpa [#allocation4], 0
    // Predicated region
    $region2: #{tpu_custom_call.1} parent=1 // pred_check
      _
    $region3: #{tpu_custom_call.1} parent=1 // pred_check_branch
      %11 = sbr.rel (0) target = $region5
    $region4: #{tpu_custom_call.1} parent=1 // pred_region
      %s13 = ssub.s32 256, 256
      %14 = vsyncadd [#allocation3], %s13
      %s15 = sshll.u32 [#allocation2], 4
      %s16 = int_to_ptr.vmem [resolvable:$true] %s15
      %21 = dma.hbm_to_vmem [thread:$0]  %s0, 256, %s16, [#allocation3], 128, 128, 8
    $region5: #{tpu_custom_call.1} parent=1 // pred_fallthru
      _
    // Predicated region
    $region6: #{tpu_custom_call.1} parent=1 // pred_check
      _
    $region7: #{tpu_custom_call.1} parent=1 // pred_check_branch
      %23 = sbr.rel (0) target = $region9
    $region8: #{tpu_custom_call.1} parent=1 // pred_region
      %s25 = ssub.s32 256, 256
      %26 = vsyncadd [#allocation6], %s25
      %s27 = sshll.u32 [#allocation5], 4
      %s28 = int_to_ptr.vmem [resolvable:$true] %s27
      %33 = dma.hbm_to_vmem [thread:$0]  %s1, 256, %s28, [#allocation6], 128, 128, 8
    $region9: #{tpu_custom_call.1} parent=1 // pred_fallthru
      _
    // Predicated region
    $region10: #{tpu_custom_call.1} parent=1 // pred_check
      _
    $region11: #{tpu_custom_call.1} parent=1 // pred_check_branch
      %35 = sbr.rel (0) target = $region13
    $region12: #{tpu_custom_call.1} parent=1 // pred_region
      %36 = dma.done [#allocation3], 256
    $region13: #{tpu_custom_call.1} parent=1 // pred_fallthru
      _
    // Predicated region
    $region14: #{tpu_custom_call.1} parent=1 // pred_check
      _
    $region15: #{tpu_custom_call.1} parent=1 // pred_check_branch
      %38 = sbr.rel (0) target = $region17
    $region16: #{tpu_custom_call.1} parent=1 // pred_region
      %39 = dma.done [#allocation6], 256
    $region17: #{tpu_custom_call.1} parent=1 // pred_fallthru
      _
    %v40 = vld [vmem:[#allocation2] sm:$0xff]
    %v41 = vld [vmem:[#allocation2 + $0x8] sm:$0xff]
    %v42 = vld [vmem:[#allocation5] sm:$0xff]
    %v43 = vld [vmem:[#allocation5 + $0x8] sm:$0xff]
    %v44 = vsub.f32 %v40, %v42
    %v45 = vsub.f32 %v41, %v43
    %v46 = vmul.f32 %v44, %v44
    %v47 = vmul.f32 %v45, %v45
    %v48 = vadd.f32 %v46, %v47
    %49 = vst [vmem:[#allocation7] sm:$0xff] %v48
    // Predicated region
    $region18: #{tpu_custom_call.1} parent=1 // pred_check
      _
    $region19: #{tpu_custom_call.1} parent=1 // pred_check_branch
      %51 = sbr.rel (0) target = $region21
    $region20: #{tpu_custom_call.1} parent=1 // pred_region
      %s53 = ssub.s32 128, 128
      %54 = vsyncadd [#allocation4], %s53
      %s56 = sshll.u32 [#allocation7], 4
      %s57 = int_to_ptr.vmem [resolvable:$true] %s56
      %59 = dma.vmem_to_hbm [thread:$0]  %s57, 128, %s2, [#allocation4]
    $region21: #{tpu_custom_call.1} parent=1 // pred_fallthru
      _
    // Predicated region
    $region22: #{tpu_custom_call.1} parent=1 // pred_check
      _
    $region23: #{tpu_custom_call.1} parent=1 // pred_check_branch
      %61 = sbr.rel (0) target = $region25
    $region24: #{tpu_custom_call.1} parent=1 // pred_region
      %62 = dma.done [#allocation4], 128
    $region25: #{tpu_custom_call.1} parent=1 // pred_fallthru
      _
    %63 = vsyncpa [#allocation3], 1
    %64 = vsyncpa [#allocation6], 1
    %65 = vsyncpa [#allocation4], 1

</llo_original>
